<compile_context>
chip_gen: v6e
topology: v6e:2x2x1
jax: 0.10.0
libtpu: 0.0.40
codegen_flags: <defaults>
</compile_context>

<pallas_src>
import jax
import jax.numpy as jnp
from jax.experimental import pallas as pl
from jax.experimental.pallas import tpu as pltpu

INPUT_SIZE = 10
HIDDEN_LAYERS = 2
HIDDEN_UNITS = 32
DROPOUT_PROB = 0.2  # inference => no-op
BATCH = 8

H = HIDDEN_UNITS

# ---- packed-parameter slab layout (sublane (8)-aligned offsets, 32 lanes) ----
W1_OFF = 0     # rows [0, 10)   : W1.T          [INPUT_SIZE, H]   ([in, out])
B1_OFF = 16    # row  16        : b1 (row)      [1, H]
W2_OFF = 24    # rows [24, 56)  : W2 (native)   [H, H]            ([out, in])
B2_OFF = 56    # rows [56, 88)  : b2 (column)   [H, 1] in lane 0
W3_OFF = 88    # rows [88, 96)  : W3 padded     [8, H] (row 0 = w3, rows 1..7 zero)
B3_OFF = 96    # slab[96, 0]    : b3 scalar
SLAB_ROWS = 104
BATCH_TILE_CAP = 2048


def mlp_kernel(x_ref, p_ref, o_ref):
    # Layer 1 batch-major on the MXU (W1 pre-transposed to [in, out]; K=10 is
    # padded internally by Mosaic).  Dropout(eval) == identity.
    x = x_ref[...]                                      # [bt, INPUT_SIZE]
    w1t = p_ref[W1_OFF:W1_OFF + INPUT_SIZE, :]          # [INPUT_SIZE, H]
    b1 = p_ref[B1_OFF:B1_OFF + 1, :]                    # [1, H]
    h = jnp.dot(x, w1t, preferred_element_type=jnp.float32) + b1
    h = jnp.maximum(h, 0.0)                             # [bt, H]

    # Switch to batch-on-lanes: one XLU transpose, then layers 2/3 run with
    # full-lane activations and the output is a lane-dense row.
    ht = h.T                                            # [H, bt]
    w2 = p_ref[W2_OFF:W2_OFF + H, :]                    # [H, H] native [out, in]
    b2 = p_ref[B2_OFF:B2_OFF + H, 0:1]                  # [H, 1]
    ht = jnp.dot(w2, ht, preferred_element_type=jnp.float32) + b2
    ht = jnp.maximum(ht, 0.0)                           # [H, bt]

    w3 = p_ref[W3_OFF:W3_OFF + 8, :]                    # [8, H] (rows 1..7 zero)
    b3 = p_ref[B3_OFF:B3_OFF + 1, 0:1]                  # [1, 1]
    y = jnp.dot(w3, ht, preferred_element_type=jnp.float32)  # [8, bt]
    o_ref[0] = y[0:1, :] + b3                           # dense (1, bt) store


def pack_params(params):
    """Pack PyTorch-layout params ([out, in] weights, [out] biases) into one slab."""
    (w1, b1), (w2, b2), (w3, b3) = params
    f32 = jnp.float32
    slab = jnp.zeros((SLAB_ROWS, H), f32)
    slab = slab.at[W1_OFF:W1_OFF + INPUT_SIZE, :].set(jnp.asarray(w1, f32).T)
    slab = slab.at[B1_OFF, :].set(jnp.asarray(b1, f32).reshape(H))
    slab = slab.at[W2_OFF:W2_OFF + H, :].set(jnp.asarray(w2, f32))
    slab = slab.at[B2_OFF:B2_OFF + H, 0].set(jnp.asarray(b2, f32).reshape(H))
    slab = slab.at[W3_OFF, :].set(jnp.asarray(w3, f32).reshape(H))
    slab = slab.at[B3_OFF, 0].set(jnp.asarray(b3, f32).reshape(()))
    return slab


def _round_up(n, m):
    return ((n + m - 1) // m) * m


def _batch_tile(batch):
    if batch <= 8:
        return batch  # single block; block dim == full array dim is legal
    # >= 2 grid steps once B exceeds one tile, so the "parallel" axis spans
    # both v7x TensorCores; cap keeps per-tile VMEM tiny (~80 KiB x tile).
    return min(BATCH_TILE_CAP, _round_up(pl.cdiv(batch, 2), 8))


@jax.jit
def regression_model_forward(x, slab):
    """Forward pass. x: (B, INPUT_SIZE), slab: packed params from pack_params."""
    batch = x.shape[0]
    bt = _batch_tile(batch)
    num_tiles = pl.cdiv(batch, bt)

    flops = 2 * batch * (INPUT_SIZE * H + H * H + 8 * H)
    bytes_accessed = 4 * (batch * INPUT_SIZE + SLAB_ROWS * H + num_tiles * bt)

    out = pl.pallas_call(
        mlp_kernel,
        out_shape=jax.ShapeDtypeStruct((num_tiles, 1, bt), jnp.float32),
        grid=(num_tiles,),
        in_specs=[
            pl.BlockSpec((bt, INPUT_SIZE), lambda i: (i, 0)),   # x tile per step
            pl.BlockSpec((SLAB_ROWS, H), lambda i: (0, 0)),     # params: constant block
        ],
        out_specs=pl.BlockSpec((1, 1, bt), lambda i: (i, 0, 0)),
        compiler_params=pltpu.CompilerParams(
            dimension_semantics=("parallel",)),
        cost_estimate=pl.CostEstimate(
            flops=flops, transcendentals=0, bytes_accessed=bytes_accessed),
    )(x.astype(jnp.float32), slab)

    # (num_tiles, 1, bt) -> (num_tiles * bt, 1); rows >= B (edge-block padding)
    # are dropped.
    return out.reshape(num_tiles * bt, 1)[:batch]


def init_params(key):
    """Deterministic PyTorch-style (uniform +/- 1/sqrt(fan_in)) init."""
    def linear(key, out_f, in_f):
        kw, kb = jax.random.split(key)
        bound = 1.0 / jnp.sqrt(jnp.float32(in_f))
        w = jax.random.uniform(kw, (out_f, in_f), jnp.float32, -bound, bound)
        b = jax.random.uniform(kb, (out_f,), jnp.float32, -bound, bound)
        return w, b

    k1, k2, k3 = jax.random.split(key, 3)
    p1 = linear(k1, HIDDEN_UNITS, INPUT_SIZE)
    p2 = linear(k2, HIDDEN_UNITS, HIDDEN_UNITS)
    p3 = linear(k3, 1, HIDDEN_UNITS)
    return (p1, p2, p3)


if __name__ == "__main__":
    key = jax.random.PRNGKey(0)
    kx, kp = jax.random.split(key)

    x = jax.random.normal(kx, (BATCH, INPUT_SIZE), jnp.float32)
    params = init_params(kp)

    # Pack once (not per forward call); the forward itself is jitted.
    slab = jax.block_until_ready(pack_params(params))

    out = regression_model_forward(x, slab)
    out = jax.block_until_ready(out)

    # Reference check against plain JAX (identical math, PyTorch layout).
    (w1, b1), (w2, b2), (w3, b3) = params
    h = jnp.maximum(x @ w1.T + b1, 0.0)
    h = jnp.maximum(h @ w2.T + b2, 0.0)
    ref = (h @ w3.T + b3).reshape(BATCH, 1)
    assert out.shape == (BATCH, 1)
    assert jnp.allclose(out, ref, atol=1e-5), "mismatch vs reference"

    print("KERNEL_OK")
</pallas_src>

<mosaic_0001>
module attributes {stable_mosaic.version = 11 : i64} {
  func.func @mlp_kernel(%arg0: i32, %arg1: memref<8x10xf32, #tpu.memory_space<vmem>>, %arg2: memref<104x32xf32, #tpu.memory_space<vmem>>, %arg3: memref<1x1x8xf32, #tpu.memory_space<vmem>>) attributes {dimension_semantics = [#tpu.dimension_semantics<parallel>], iteration_bounds = array<i64: 1>, scalar_prefetch = 0 : i64, scratch_operands = 0 : i64, tpu.core_type = #tpu.core_type<tc>, window_params = [{transform_indices = @transform_0, window_bounds = array<i64: 8, 10>}, {pipeline_mode = #tpu.pipeline_mode<synchronous>, transform_indices = @transform_1, window_bounds = array<i64: 104, 32>}, {transform_indices = @transform_2, window_bounds = array<i64: 1, 1, 8>}]} {
    %c0 = arith.constant 0 : index
    %c0_0 = arith.constant 0 : index
    %0 = vector.load %arg1[%c0, %c0_0] : memref<8x10xf32, #tpu.memory_space<vmem>>, vector<8x10xf32>
    %c0_1 = arith.constant 0 : index
    %c0_2 = arith.constant 0 : index
    %1 = vector.load %arg2[%c0_1, %c0_2] : memref<104x32xf32, #tpu.memory_space<vmem>>, vector<10x32xf32>
    %c16 = arith.constant 16 : index
    %c0_3 = arith.constant 0 : index
    %2 = vector.load %arg2[%c16, %c0_3] : memref<104x32xf32, #tpu.memory_space<vmem>>, vector<1x32xf32>
    %cst = arith.constant dense<0.000000e+00> : vector<8x32xf32>
    %3 = tpu.matmul %0, %1, %cst {dimension_numbers = #tpu.dot_dimension_numbers<[1], [0], [0], [1], [0, 0, 1, 1], [], []>} : vector<8x10xf32>, vector<10x32xf32>, vector<8x32xf32> -> vector<8x32xf32>
    %4 = vector.broadcast %2 : vector<1x32xf32> to vector<8x32xf32>
    %5 = arith.addf %3, %4 : vector<8x32xf32>
    %cst_4 = arith.constant 0.000000e+00 : f32
    %6 = vector.broadcast %cst_4 : f32 to vector<8x32xf32>
    %7 = arith.maximumf %5, %6 : vector<8x32xf32>
    %8 = tpu.transpose %7, [1, 0] : vector<8x32xf32> -> vector<32x8xf32>
    %c24 = arith.constant 24 : index
    %c0_5 = arith.constant 0 : index
    %9 = vector.load %arg2[%c24, %c0_5] : memref<104x32xf32, #tpu.memory_space<vmem>>, vector<32x32xf32>
    %c56 = arith.constant 56 : index
    %c0_6 = arith.constant 0 : index
    %10 = vector.load %arg2[%c56, %c0_6] : memref<104x32xf32, #tpu.memory_space<vmem>>, vector<32x1xf32>
    %cst_7 = arith.constant dense<0.000000e+00> : vector<32x8xf32>
    %11 = tpu.matmul %9, %8, %cst_7 {dimension_numbers = #tpu.dot_dimension_numbers<[1], [0], [0], [1], [0, 0, 1, 1], [], []>} : vector<32x32xf32>, vector<32x8xf32>, vector<32x8xf32> -> vector<32x8xf32>
    %12 = vector.broadcast %10 : vector<32x1xf32> to vector<32x8xf32>
    %13 = arith.addf %11, %12 : vector<32x8xf32>
    %cst_8 = arith.constant 0.000000e+00 : f32
    %14 = vector.broadcast %cst_8 : f32 to vector<32x8xf32>
    %15 = arith.maximumf %13, %14 : vector<32x8xf32>
    %c88 = arith.constant 88 : index
    %c0_9 = arith.constant 0 : index
    %16 = vector.load %arg2[%c88, %c0_9] : memref<104x32xf32, #tpu.memory_space<vmem>>, vector<8x32xf32>
    %c96 = arith.constant 96 : index
    %c0_10 = arith.constant 0 : index
    %17 = vector.load %arg2[%c96, %c0_10] : memref<104x32xf32, #tpu.memory_space<vmem>>, vector<1x1xf32>
    %cst_11 = arith.constant dense<0.000000e+00> : vector<8x8xf32>
    %18 = tpu.matmul %16, %15, %cst_11 {dimension_numbers = #tpu.dot_dimension_numbers<[1], [0], [0], [1], [0, 0, 1, 1], [], []>} : vector<8x32xf32>, vector<32x8xf32>, vector<8x8xf32> -> vector<8x8xf32>
    %19 = vector.extract_strided_slice %18 {offsets = [0, 0], sizes = [1, 8], strides = [1, 1]} : vector<8x8xf32> to vector<1x8xf32>
    %20 = vector.broadcast %17 : vector<1x1xf32> to vector<1x8xf32>
    %21 = arith.addf %19, %20 : vector<1x8xf32>
    %c0_12 = arith.constant 0 : index
    %c0_13 = arith.constant 0 : index
    %c0_14 = arith.constant 0 : index
    %22 = vector.load %arg3[%c0_12, %c0_13, %c0_14] : memref<1x1x8xf32, #tpu.memory_space<vmem>>, vector<1x1x8xf32>
    %23 = vector.shape_cast %22 : vector<1x1x8xf32> to vector<1x8xf32>
    %24 = vector.shape_cast %21 : vector<1x8xf32> to vector<1x1x8xf32>
    tpu.vector_store %arg3[%c0_12, %c0_13, %c0_14], %24 {strides = array<i32>} : memref<1x1x8xf32, #tpu.memory_space<vmem>>, vector<1x1x8xf32>,
    return
  }
  func.func @transform_0(%arg0: i32) -> (i32, i32) {
    %c0_i32 = arith.constant 0 : i32
    %c0_i32_0 = arith.constant 0 : i32
    return %arg0, %c0_i32 : i32, i32
  }
  func.func @transform_1(%arg0: i32) -> (i32, i32) {
    %c0_i32 = arith.constant 0 : i32
    %c0_i32_0 = arith.constant 0 : i32
    %c0_i32_1 = arith.constant 0 : i32
    return %c0_i32, %c0_i32_0 : i32, i32
  }
  func.func @transform_2(%arg0: i32) -> (i32, i32, i32) {
    %c0_i32 = arith.constant 0 : i32
    %c0_i32_0 = arith.constant 0 : i32
    %c0_i32_1 = arith.constant 0 : i32
    return %arg0, %c0_i32, %c0_i32_0 : i32, i32, i32
  }
}

</mosaic_0001>

<llo_original>
// kernel: regression_model_forward.1
$region0: #{regression_model_forward.1}
  #allocation0 [shape = 'u32[]', space=smem, size = 0x4, offset = 0x4, fixed_abs, tag = 'smem constant byte address 0x4 - core index']
  #allocation1 [shape = 'u32[144,128]{1,0:T(1,128)}', space=vmem, size = 0x12000, scoped, tag = 'internal scratch']
  %s0 = inlined_call_operand.vmem [shape: f32[8,10], index: 0, kind: input, shape index: {}]
  %s1 = inlined_call_operand.vmem [shape: f32[104,32], index: 1, kind: input, shape index: {}]
  %s2 = inlined_call_operand.hbm [shape: f32[1,1,8], index: 2, kind: output, shape index: {}]
  %s3 = sld [smem:[#allocation0]]
  $region18: #{regression_model_forward.1} parent=0
    _
  %s5 = ssub.s32 1, %s3
  %s6 = scalar_select 0, %s5, %s3
  $region1: #{regression_model_forward.1} parent=0
    #allocation2 [shape = 'u8[512]{0}', space=vmem, size = 0x400, scoped, tag = 'output window, operand 0, single buffered']
    #allocation3 [shape = 's32[1]{0}', space=sflag, size = 0x4, scoped, tag = 'scoped memory for regression_model_forward.1']
    %7 = vsyncpa [#allocation3], 0
    // Predicated region
    $region2: #{regression_model_forward.1} parent=1 // pred_check
      _
    $region3: #{regression_model_forward.1} parent=1 // pred_check_branch
      %9 = sbr.rel (0) target = $region5
    $region4: #{regression_model_forward.1} parent=1 // pred_region
      _
    $region5: #{regression_model_forward.1} parent=1 // pred_fallthru
      _
    // Predicated region
    $region6: #{regression_model_forward.1} parent=1 // pred_check
      _
    $region7: #{regression_model_forward.1} parent=1 // pred_check_branch
      %11 = sbr.rel (0) target = $region9
    $region8: #{regression_model_forward.1} parent=1 // pred_region
      _
    $region9: #{regression_model_forward.1} parent=1 // pred_fallthru
      _
    %v12 = vld [vmem:[%s0] sm:$0xff]
    %v13 = vld [vmem:[%s1] sm:$0xff]
    %v14 = vld [vmem:[%s1 + $0x8] sm:$0x3]
    %v15 = vld [vmem:[%s1 + $0x10] sm:$0x1]
    %v16 = vlaneseq
    %v17 = vshrl.u32 %v16, 7
    %v18 = vsub.s32 0, %v17
    %v19 = vrot.slane %v15, %v18
    %vm20 = vcmask 80896
    %v22 = vsel %vm20, %v12, 0
    %vm24 = vcmask 1041408
    %v26 = vsel %vm24, %v14, 0
    %28 = vmatprep.subr.mxu0 0.0
    %29 = vmatpush1.msra.mxu0 0.0
    %30 = vmatprep.subr.mxu0 0.0
    %31 = vmatpush1.msra.mxu0 0.0
    %32 = vmatprep.subr.mxu0 0.0
    %33 = vmatpush1.msra.mxu0 0.0
    %34 = vmatprep.subr.mxu0 0.0
    %35 = vmatpush1.msra.mxu0 0.0
    %36 = vmatprep.subr.mxu0 0.0
    %37 = vmatpush1.msra.mxu0 0.0
    %38 = vmatprep.subr.mxu0 0.0
    %39 = vmatpush1.msra.mxu0 0.0
    %40 = vmatprep.subr.mxu0 0.0
    %41 = vmatpush1.msra.mxu0 0.0
    %42 = vmatprep.subr.mxu0 0.0
    %43 = vmatpush1.msra.mxu0 0.0
    %44 = vmatprep.subr.mxu0 0.0
    %45 = vmatpush1.msra.mxu0 0.0
    %46 = vmatprep.subr.mxu0 0.0
    %47 = vmatpush1.msra.mxu0 0.0
    %48 = vmatprep.subr.mxu0 0.0
    %49 = vmatpush1.msra.mxu0 0.0
    %50 = vmatprep.subr.mxu0 0.0
    %51 = vmatpush1.msra.mxu0 0.0
    %52 = vmatprep.subr.mxu0 0.0
    %53 = vmatpush1.msra.mxu0 0.0
    %54 = vmatprep.subr.mxu0 0.0
    %55 = vmatpush1.msra.mxu0 0.0
    %56 = vmatprep.subr.mxu0 0.0
    %57 = vmatpush1.msra.mxu0 %v26
    %58 = vmatprep.subr.mxu0 0.0
    %59 = vmatpush1.msra.mxu0 %v13
    %60 = vmatprep.subr.mxu0 0.0
    %61 = vmatpush2.msra.mxu0 0.0
    %62 = vmatprep.subr.mxu0 0.0
    %63 = vmatpush2.msra.mxu0 0.0
    %64 = vmatprep.subr.mxu0 0.0
    %65 = vmatpush2.msra.mxu0 0.0
    %66 = vmatprep.subr.mxu0 0.0
    %67 = vmatpush2.msra.mxu0 0.0
    %68 = vmatprep.subr.mxu0 0.0
    %69 = vmatpush2.msra.mxu0 0.0
    %70 = vmatprep.subr.mxu0 0.0
    %71 = vmatpush2.msra.mxu0 0.0
    %72 = vmatprep.subr.mxu0 0.0
    %73 = vmatpush2.msra.mxu0 0.0
    %74 = vmatprep.subr.mxu0 0.0
    %75 = vmatpush2.msra.mxu0 0.0
    %76 = vmatprep.subr.mxu0 0.0
    %77 = vmatpush2.msra.mxu0 0.0
    %78 = vmatprep.subr.mxu0 0.0
    %79 = vmatpush2.msra.mxu0 0.0
    %80 = vmatprep.subr.mxu0 0.0
    %81 = vmatpush2.msra.mxu0 0.0
    %82 = vmatprep.subr.mxu0 0.0
    %83 = vmatpush2.msra.mxu0 0.0
    %84 = vmatprep.subr.mxu0 0.0
    %85 = vmatpush2.msra.mxu0 0.0
    %86 = vmatprep.subr.mxu0 0.0
    %87 = vmatpush2.msra.mxu0 0.0
    %88 = vmatprep.subr.mxu0 0.0
    %89 = vmatpush2.msra.mxu0 0.0
    %90 = vmatprep.subr.mxu0 0.0
    %91 = vmatpush2.msra.mxu0 0.0
    %92 = vmatprep.mubr.f32.mxu0 0.0
    %93 = vmatmul.mubr.f32.gmra.mxu0 %v22
    %v94 = vpop.f32.mrf.mxu0
    %v95 = vadd.f32 %v19, %v94
    %v96 = vpop.f32.mrf.mxu0
    %97 = vdwg.mxu0
    %v98 = vmax.f32 %v95, 0.0
    %v99 = vld [vmem:[%s1 + $0x18] sm:$0xff]
    %v100 = vld [vmem:[%s1 + $0x20] sm:$0xff]
    %v101 = vld [vmem:[%s1 + $0x28] sm:$0xff]
    %v102 = vld [vmem:[%s1 + $0x30] sm:$0xff]
    %v103 = vld [vmem:[%s1 + $0x38] sm:$0xff]
    %v104 = vld [vmem:[%s1 + $0x40] sm:$0xff]
    %v105 = vld [vmem:[%s1 + $0x48] sm:$0xff]
    %v106 = vld [vmem:[%s1 + $0x50] sm:$0xff]
    %108 = vset.pattern.permute.xlu0 0
    %109 = vperm.xlu0 %108, %v103
    %v110 = vpop.permute.xlu0 %109
    %113 = vset.pattern.permute.xlu0 0
    %114 = vperm.xlu0 %113, %v104
    %v115 = vpop.permute.xlu0 %114
    %118 = vset.pattern.permute.xlu0 0
    %119 = vperm.xlu0 %118, %v105
    %v120 = vpop.permute.xlu0 %119
    %123 = vset.pattern.permute.xlu0 0
    %124 = vperm.xlu0 %123, %v106
    %v125 = vpop.permute.xlu0 %124
    %vm127 = vcmask 261120
    %v129 = vsel %vm127, %v99, 0
    %v132 = vsel %vm127, %v100, 0
    %v135 = vsel %vm127, %v101, 0
    %v138 = vsel %vm127, %v102, 0
    %v141 = vsel %vm127, %v98, 0
    %143 = vmatprep.subr.mxu0 0.0
    %144 = vmatpush1.xpose.msra.mxu0 0.0
    %145 = vmatprep.subr.mxu0 0.0
    %146 = vmatpush1.xpose.msra.mxu0 0.0
    %147 = vmatprep.subr.mxu0 0.0
    %148 = vmatpush1.xpose.msra.mxu0 0.0
    %149 = vmatprep.subr.mxu0 0.0
    %150 = vmatpush1.xpose.msra.mxu0 0.0
    %151 = vmatprep.subr.mxu0 0.0
    %152 = vmatpush1.xpose.msra.mxu0 0.0
    %153 = vmatprep.subr.mxu0 0.0
    %154 = vmatpush1.xpose.msra.mxu0 0.0
    %155 = vmatprep.subr.mxu0 0.0
    %156 = vmatpush1.xpose.msra.mxu0 0.0
    %157 = vmatprep.subr.mxu0 0.0
    %158 = vmatpush1.xpose.msra.mxu0 0.0
    %159 = vmatprep.subr.mxu0 0.0
    %160 = vmatpush1.xpose.msra.mxu0 0.0
    %161 = vmatprep.subr.mxu0 0.0
    %162 = vmatpush1.xpose.msra.mxu0 0.0
    %163 = vmatprep.subr.mxu0 0.0
    %164 = vmatpush1.xpose.msra.mxu0 0.0
    %165 = vmatprep.subr.mxu0 0.0
    %166 = vmatpush1.xpose.msra.mxu0 0.0
    %167 = vmatprep.subr.mxu0 0.0
    %168 = vmatpush1.xpose.msra.mxu0 0.0
    %169 = vmatprep.subr.mxu0 0.0
    %170 = vmatpush1.xpose.msra.mxu0 0.0
    %171 = vmatprep.subr.mxu0 0.0
    %172 = vmatpush1.xpose.msra.mxu0 0.0
    %173 = vmatprep.subr.mxu0 0.0
    %174 = vmatpush1.xpose.msra.mxu0 %v141
    %175 = vmatprep.subr.mxu0 0.0
    %176 = vmatpush2.xpose.msra.mxu0 0.0
    %177 = vmatprep.subr.mxu0 0.0
    %178 = vmatpush2.xpose.msra.mxu0 0.0
    %179 = vmatprep.subr.mxu0 0.0
    %180 = vmatpush2.xpose.msra.mxu0 0.0
    %181 = vmatprep.subr.mxu0 0.0
    %182 = vmatpush2.xpose.msra.mxu0 0.0
    %183 = vmatprep.subr.mxu0 0.0
    %184 = vmatpush2.xpose.msra.mxu0 0.0
    %185 = vmatprep.subr.mxu0 0.0
    %186 = vmatpush2.xpose.msra.mxu0 0.0
    %187 = vmatprep.subr.mxu0 0.0
    %188 = vmatpush2.xpose.msra.mxu0 0.0
    %189 = vmatprep.subr.mxu0 0.0
    %190 = vmatpush2.xpose.msra.mxu0 0.0
    %191 = vmatprep.subr.mxu0 0.0
    %192 = vmatpush2.xpose.msra.mxu0 0.0
    %193 = vmatprep.subr.mxu0 0.0
    %194 = vmatpush2.xpose.msra.mxu0 0.0
    %195 = vmatprep.subr.mxu0 0.0
    %196 = vmatpush2.xpose.msra.mxu0 0.0
    %197 = vmatprep.subr.mxu0 0.0
    %198 = vmatpush2.xpose.msra.mxu0 0.0
    %199 = vmatprep.subr.mxu0 0.0
    %200 = vmatpush2.xpose.msra.mxu0 0.0
    %201 = vmatprep.subr.mxu0 0.0
    %202 = vmatpush2.xpose.msra.mxu0 0.0
    %203 = vmatprep.subr.mxu0 0.0
    %204 = vmatpush2.xpose.msra.mxu0 0.0
    %205 = vmatprep.subr.mxu0 0.0
    %206 = vmatpush2.xpose.msra.mxu0 0.0
    %207 = vmatprep.mubr.f32.mxu0 0.0
    %208 = vmatmul.mubr.f32.gmra.mxu0 %v129
    %v209 = vpop.f32.mrf.mxu0
    %v210 = vadd.f32 %v110, %v209
    %v211 = vpop.f32.mrf.mxu0
    %212 = vmatprep.mubr.f32.mxu0 0.0
    %213 = vmatmul.mubr.f32.gmra.mxu0 %v132
    %v214 = vpop.f32.mrf.mxu0
    %v215 = vadd.f32 %v115, %v214
    %v216 = vpop.f32.mrf.mxu0
    %217 = vmatprep.mubr.f32.mxu0 0.0
    %218 = vmatmul.mubr.f32.gmra.mxu0 %v135
    %v219 = vpop.f32.mrf.mxu0
    %v220 = vadd.f32 %v120, %v219
    %v221 = vpop.f32.mrf.mxu0
    %222 = vmatprep.mubr.f32.mxu0 0.0
    %223 = vmatmul.mubr.f32.gmra.mxu0 %v138
    %v224 = vpop.f32.mrf.mxu0
    %v225 = vadd.f32 %v125, %v224
    %v226 = vpop.f32.mrf.mxu0
    %227 = vdwg.mxu0
    %v228 = vmax.f32 %v210, 0.0
    %v229 = vmax.f32 %v215, 0.0
    %v230 = vmax.f32 %v220, 0.0
    %v231 = vmax.f32 %v225, 0.0
    %v232 = vld [vmem:[%s1 + $0x58] sm:$0xff]
    %v233 = vld [vmem:[%s1 + $0x60] sm:$0x1]
    %v235 = vsel %vm127, %v232, 0
    %237 = vmatprep.subr.mxu0 0.0
    %238 = vmatpush1.msra.mxu0 0.0
    %239 = vmatprep.subr.mxu0 0.0
    %240 = vmatpush1.msra.mxu0 0.0
    %241 = vmatprep.subr.mxu0 0.0
    %242 = vmatpush1.msra.mxu0 0.0
    %243 = vmatprep.subr.mxu0 0.0
    %244 = vmatpush1.msra.mxu0 0.0
    %245 = vmatprep.subr.mxu0 0.0
    %246 = vmatpush1.msra.mxu0 0.0
    %247 = vmatprep.subr.mxu0 0.0
    %248 = vmatpush1.msra.mxu0 0.0
    %249 = vmatprep.subr.mxu0 0.0
    %250 = vmatpush1.msra.mxu0 0.0
    %251 = vmatprep.subr.mxu0 0.0
    %252 = vmatpush1.msra.mxu0 0.0
    %253 = vmatprep.subr.mxu0 0.0
    %254 = vmatpush1.msra.mxu0 0.0
    %255 = vmatprep.subr.mxu0 0.0
    %256 = vmatpush1.msra.mxu0 0.0
    %257 = vmatprep.subr.mxu0 0.0
    %258 = vmatpush1.msra.mxu0 0.0
    %259 = vmatprep.subr.mxu0 0.0
    %260 = vmatpush1.msra.mxu0 0.0
    %261 = vmatprep.subr.mxu0 0.0
    %262 = vmatpush1.msra.mxu0 %v231
    %263 = vmatprep.subr.mxu0 0.0
    %264 = vmatpush1.msra.mxu0 %v230
    %265 = vmatprep.subr.mxu0 0.0
    %266 = vmatpush1.msra.mxu0 %v229
    %267 = vmatprep.subr.mxu0 0.0
    %268 = vmatpush1.msra.mxu0 %v228
    %269 = vmatprep.subr.mxu0 0.0
    %270 = vmatpush2.msra.mxu0 0.0
    %271 = vmatprep.subr.mxu0 0.0
    %272 = vmatpush2.msra.mxu0 0.0
    %273 = vmatprep.subr.mxu0 0.0
    %274 = vmatpush2.msra.mxu0 0.0
    %275 = vmatprep.subr.mxu0 0.0
    %276 = vmatpush2.msra.mxu0 0.0
    %277 = vmatprep.subr.mxu0 0.0
    %278 = vmatpush2.msra.mxu0 0.0
    %279 = vmatprep.subr.mxu0 0.0
    %280 = vmatpush2.msra.mxu0 0.0
    %281 = vmatprep.subr.mxu0 0.0
    %282 = vmatpush2.msra.mxu0 0.0
    %283 = vmatprep.subr.mxu0 0.0
    %284 = vmatpush2.msra.mxu0 0.0
    %285 = vmatprep.subr.mxu0 0.0
    %286 = vmatpush2.msra.mxu0 0.0
    %287 = vmatprep.subr.mxu0 0.0
    %288 = vmatpush2.msra.mxu0 0.0
    %289 = vmatprep.subr.mxu0 0.0
    %290 = vmatpush2.msra.mxu0 0.0
    %291 = vmatprep.subr.mxu0 0.0
    %292 = vmatpush2.msra.mxu0 0.0
    %293 = vmatprep.subr.mxu0 0.0
    %294 = vmatpush2.msra.mxu0 0.0
    %295 = vmatprep.subr.mxu0 0.0
    %296 = vmatpush2.msra.mxu0 0.0
    %297 = vmatprep.subr.mxu0 0.0
    %298 = vmatpush2.msra.mxu0 0.0
    %299 = vmatprep.subr.mxu0 0.0
    %300 = vmatpush2.msra.mxu0 0.0
    %301 = vmatprep.mubr.f32.mxu0 0.0
    %302 = vmatmul.mubr.f32.gmra.mxu0 %v235
    %v303 = vpop.f32.mrf.mxu0
    %v304 = vadd.f32 0.0, %v303
    %v305 = vpop.f32.mrf.mxu0
    %306 = vdwg.mxu0
    %308 = vset.pattern.permute.xlu0 0
    %309 = vperm.xlu0 %308, %v233
    %v310 = vpop.permute.xlu0 %309
    %v312 = vadd.f32 %v304, %v310
    %vm313 = vcmask 57344
    %314 = vst.msk [vmem:[#allocation2] sm:$0x1] %vm313, %v312
    // Predicated region
    $region10: #{regression_model_forward.1} parent=1 // pred_check
      _
    $region11: #{regression_model_forward.1} parent=1 // pred_check_branch
      %316 = sbr.rel (0) target = $region13
    $region12: #{regression_model_forward.1} parent=1 // pred_region
      %s318 = ssub.s32 16, 16
      %319 = vsyncadd [#allocation3], %s318
      %s321 = sshll.u32 [#allocation2], 4
      %s322 = int_to_ptr.vmem [resolvable:$true] %s321
      %324 = dma.vmem_to_hbm [thread:$0]  %s322, 16, %s2, [#allocation3]
    $region13: #{regression_model_forward.1} parent=1 // pred_fallthru
      _
    // Predicated region
    $region14: #{regression_model_forward.1} parent=1 // pred_check
      _
    $region15: #{regression_model_forward.1} parent=1 // pred_check_branch
      %326 = sbr.rel (0) target = $region17
    $region16: #{regression_model_forward.1} parent=1 // pred_region
      %327 = dma.done [#allocation3], 16
    $region17: #{regression_model_forward.1} parent=1 // pred_fallthru
      _
    %328 = vsyncpa [#allocation3], 1

</llo_original>
